<compile_context>
chip_gen: v7x
topology: tpu7x:2x2x1
jax: 0.10.0
libtpu: 0.0.40
codegen_flags: <defaults>
</compile_context>

<pallas_src>
import jax
import jax.numpy as jnp
from jax.experimental import pallas as pl
from jax.experimental.pallas import tpu as pltpu

# The dim-1 concatenation order of v3 (0 -> a, 1 -> b, 2 -> c, 3 -> v2).
_V3_ORDER = (0, 1, 2, 3, 0, 1, 2, 1, 2, 3, 1, 2, 0, 3, 2, 0, 1, 2, 1, 2, 0)


def _model_kernel(a_ref, b_ref, c_ref, v3_ref, v2_ref):
    a = a_ref[...]
    b = b_ref[...]
    c = c_ref[...]

    # torch: v2 = b + a   (elementwise add on the VPU)
    v2 = b + a

    # torch: v3 = torch.cat([...21 pieces...], dim=1)
    # Assembled entirely in registers; one store per output.
    pieces = (a, b, c, v2)
    v3 = jnp.concatenate([pieces[i] for i in _V3_ORDER], axis=1)

    v3_ref[...] = v3
    v2_ref[...] = v2


@jax.jit
def model_forward(a, b, c):
    """Returns (v1, v3, v2) — the pieces of the reference output."""
    M, N = a.shape
    assert b.shape == (M, N) and c.shape == (M, N)

    v3_width = len(_V3_ORDER) * N  # 84 for N=4

    vmem_spec = pl.BlockSpec(memory_space=pltpu.MemorySpace.VMEM)

    v3, v2 = pl.pallas_call(
        _model_kernel,
        out_shape=(
            jax.ShapeDtypeStruct((M, v3_width), a.dtype),
            jax.ShapeDtypeStruct((M, N), a.dtype),
        ),
        in_specs=[vmem_spec, vmem_spec, vmem_spec],
        out_specs=(vmem_spec, vmem_spec),
    )(a, b, c)

    v1 = a  # torch.cat([a], 1) == a

    # TODO(synk): the reference's final `torch.cat([v1, v3, v2, v3, v2, v3, v1], 0)`
    # is shape-invalid even in PyTorch (dim-1 widths 4 vs 84 differ), so the
    # axis-0 concat cannot be reproduced; return its constituent pieces instead.
    return v1, v3, v2


if __name__ == "__main__":
    key = jax.random.PRNGKey(0)
    k = jax.random.split(key, 6)

    # Mirror the module-scope shape hints: a = (2,3)@(3,4), b = (2,2)@(2,4),
    # c = (2,5)@(5,4)  -> all (2, 4) float32.  (Glue matmuls stay in plain JAX.)
    a = jax.random.normal(k[0], (2, 3), jnp.float32) @ jax.random.normal(k[1], (3, 4), jnp.float32)
    b = jax.random.normal(k[2], (2, 2), jnp.float32) @ jax.random.normal(k[3], (2, 4), jnp.float32)
    c = jax.random.normal(k[4], (2, 5), jnp.float32) @ jax.random.normal(k[5], (5, 4), jnp.float32)

    v1, v3, v2 = jax.block_until_ready(model_forward(a, b, c))

    # Reference check in plain JAX.
    v2_ref = b + a
    pieces = (a, b, c, v2_ref)
    v3_ref = jnp.concatenate([pieces[i] for i in _V3_ORDER], axis=1)
    assert v1.shape == (2, 4) and v2.shape == (2, 4) and v3.shape == (2, 84)
    assert jnp.allclose(v2, v2_ref, atol=1e-6)
    assert jnp.allclose(v3, v3_ref, atol=1e-6)
    assert jnp.allclose(v1, a, atol=1e-6)

    print("KERNEL_OK")
</pallas_src>

<mosaic_0001>
module attributes {stable_mosaic.version = 11 : i64} {
  func.func @_model_kernel(%arg0: memref<2x4xf32, #tpu.memory_space<vmem>>, %arg1: memref<2x4xf32, #tpu.memory_space<vmem>>, %arg2: memref<2x4xf32, #tpu.memory_space<vmem>>, %arg3: memref<2x84xf32, #tpu.memory_space<vmem>>, %arg4: memref<2x4xf32, #tpu.memory_space<vmem>>) attributes {dimension_semantics = [], scalar_prefetch = 0 : i64, scratch_operands = 0 : i64, tpu.core_type = #tpu.core_type<tc>} {
    %c0 = arith.constant 0 : index
    %c0_0 = arith.constant 0 : index
    %0 = vector.load %arg0[%c0, %c0_0] : memref<2x4xf32, #tpu.memory_space<vmem>>, vector<2x4xf32>
    %c0_1 = arith.constant 0 : index
    %c0_2 = arith.constant 0 : index
    %1 = vector.load %arg1[%c0_1, %c0_2] : memref<2x4xf32, #tpu.memory_space<vmem>>, vector<2x4xf32>
    %c0_3 = arith.constant 0 : index
    %c0_4 = arith.constant 0 : index
    %2 = vector.load %arg2[%c0_3, %c0_4] : memref<2x4xf32, #tpu.memory_space<vmem>>, vector<2x4xf32>
    %3 = arith.addf %1, %0 : vector<2x4xf32>
    %4 = tpu.concatenate %0, %1, %2, %3, %0, %1, %2, %1, %2, %3, %1, %2, %0, %3, %2, %0 in 1 : vector<2x4xf32>, vector<2x4xf32>, vector<2x4xf32>, vector<2x4xf32>, vector<2x4xf32>, vector<2x4xf32>, vector<2x4xf32>, vector<2x4xf32>, vector<2x4xf32>, vector<2x4xf32>, vector<2x4xf32>, vector<2x4xf32>, vector<2x4xf32>, vector<2x4xf32>, vector<2x4xf32>, vector<2x4xf32> -> vector<2x64xf32>
    %5 = tpu.concatenate %1, %2, %1, %2, %0 in 1 : vector<2x4xf32>, vector<2x4xf32>, vector<2x4xf32>, vector<2x4xf32>, vector<2x4xf32> -> vector<2x20xf32>
    %6 = tpu.concatenate %4, %5 in 1 : vector<2x64xf32>, vector<2x20xf32> -> vector<2x84xf32>
    %c0_5 = arith.constant 0 : index
    %c0_6 = arith.constant 0 : index
    %7 = vector.load %arg3[%c0_5, %c0_6] : memref<2x84xf32, #tpu.memory_space<vmem>>, vector<2x84xf32>
    tpu.vector_store %arg3[%c0_5, %c0_6], %6 {strides = array<i32>} : memref<2x84xf32, #tpu.memory_space<vmem>>, vector<2x84xf32>,
    %c0_7 = arith.constant 0 : index
    %c0_8 = arith.constant 0 : index
    %8 = vector.load %arg4[%c0_7, %c0_8] : memref<2x4xf32, #tpu.memory_space<vmem>>, vector<2x4xf32>
    tpu.vector_store %arg4[%c0_7, %c0_8], %3 {strides = array<i32>} : memref<2x4xf32, #tpu.memory_space<vmem>>, vector<2x4xf32>,
    return
  }
}

</mosaic_0001>

<llo_original>
// kernel: model_forward.1
$region0: #{model_forward.1}
  #allocation0 [shape = 'u32[]', space=smem, size = 0x4, offset = 0x4, fixed_abs, tag = 'smem constant byte address 0x4 - core index']
  #allocation1 [shape = 'u32[144,128]{1,0:T(1,128)}', space=vmem, size = 0x12000, scoped, tag = 'internal scratch']
  %s0 = inlined_call_operand.vmem [shape: f32[2,4], index: 0, kind: input, shape index: {}]
  %s1 = inlined_call_operand.hbm [shape: f32[2,4], index: 1, kind: input, shape index: {}]
  %s2 = inlined_call_operand.hbm [shape: f32[2,4], index: 2, kind: input, shape index: {}]
  %s3 = inlined_call_operand.hbm [shape: f32[2,84], index: 3, kind: output, shape index: {0}]
  %s4 = inlined_call_operand.hbm [shape: f32[2,4], index: 4, kind: output, shape index: {1}]
  %5 = xla_tuple %s3, %s4
  %s6 = sld [smem:[#allocation0]]
  $region38: #{model_forward.1} parent=0
    _
  %s8 = ssub.s32 1, %s6
  %s9 = scalar_select 0, %s8, %s6
  $region1: #{model_forward.1} parent=0
    #allocation2 [shape = 'u8[1024]{0}', space=vmem, size = 0x400, scoped, tag = 'input window, operand 1, single buffered']
    #allocation3 [shape = 's32[1]{0}', space=sflag, size = 0x4, scoped, tag = 'scoped memory for model_forward.1']
    #allocation4 [shape = 's32[1]{0}', space=sflag, size = 0x4, scoped, tag = 'scoped memory for model_forward.1']
    #allocation5 [shape = 'u8[1024]{0}', space=vmem, size = 0x400, scoped, tag = 'input window, operand 2, single buffered']
    #allocation6 [shape = 's32[1]{0}', space=sflag, size = 0x4, scoped, tag = 'scoped memory for model_forward.1']
    #allocation7 [shape = 'u8[1024]{0}', space=vmem, size = 0x400, scoped, tag = 'output window, operand 0, single buffered']
    #allocation8 [shape = 'u8[1024]{0}', space=vmem, size = 0x400, scoped, tag = 'output window, operand 1, single buffered']
    #allocation9 [shape = 's32[1]{0}', space=sflag, size = 0x4, scoped, tag = 'scoped memory for model_forward.1']
    %10 = vsyncpa [#allocation3], 0
    %11 = vsyncpa [#allocation6], 0
    %12 = vsyncpa [#allocation4], 0
    %13 = vsyncpa [#allocation9], 0
    // Predicated region
    $region2: #{model_forward.1} parent=1 // pred_check
      _
    $region3: #{model_forward.1} parent=1 // pred_check_branch
      %15 = sbr.rel (0) target = $region5
    $region4: #{model_forward.1} parent=1 // pred_region
      _
    $region5: #{model_forward.1} parent=1 // pred_fallthru
      _
    // Predicated region
    $region6: #{model_forward.1} parent=1 // pred_check
      _
    $region7: #{model_forward.1} parent=1 // pred_check_branch
      %17 = sbr.rel (0) target = $region9
    $region8: #{model_forward.1} parent=1 // pred_region
      %s19 = ssub.s32 32, 32
      %20 = vsyncadd [#allocation3], %s19
      %s22 = sshll.u32 [#allocation2], 4
      %s23 = int_to_ptr.vmem [resolvable:$true] %s22
      %25 = dma.hbm_to_vmem [thread:$0]  %s1, 32, %s23, [#allocation3]
    $region9: #{model_forward.1} parent=1 // pred_fallthru
      _
    // Predicated region
    $region10: #{model_forward.1} parent=1 // pred_check
      _
    $region11: #{model_forward.1} parent=1 // pred_check_branch
      %27 = sbr.rel (0) target = $region13
    $region12: #{model_forward.1} parent=1 // pred_region
      %s29 = ssub.s32 32, 32
      %30 = vsyncadd [#allocation6], %s29
      %s32 = sshll.u32 [#allocation5], 4
      %s33 = int_to_ptr.vmem [resolvable:$true] %s32
      %35 = dma.hbm_to_vmem [thread:$0]  %s2, 32, %s33, [#allocation6]
    $region13: #{model_forward.1} parent=1 // pred_fallthru
      _
    // Predicated region
    $region14: #{model_forward.1} parent=1 // pred_check
      _
    $region15: #{model_forward.1} parent=1 // pred_check_branch
      %37 = sbr.rel (0) target = $region17
    $region16: #{model_forward.1} parent=1 // pred_region
      %38 = dma.done [#allocation3], 32
    $region17: #{model_forward.1} parent=1 // pred_fallthru
      _
    // Predicated region
    $region18: #{model_forward.1} parent=1 // pred_check
      _
    $region19: #{model_forward.1} parent=1 // pred_check_branch
      %40 = sbr.rel (0) target = $region21
    $region20: #{model_forward.1} parent=1 // pred_region
      %41 = dma.done [#allocation6], 32
    $region21: #{model_forward.1} parent=1 // pred_fallthru
      _
    %v42 = vld [vmem:[%s0] sm:$0x3]
    %v43 = vld [vmem:[#allocation2] sm:$0x3]
    %v44 = vld [vmem:[#allocation5] sm:$0x3]
    %v45 = vadd.f32 %v43, %v42
    %47 = vrot.lane.b32.xlu0 %v43, 4
    %v48 = vpop.permute.xlu0 %47
    %51 = vrot.lane.b32.xlu0 %v44, 8
    %v52 = vpop.permute.xlu0 %51
    %55 = vrot.lane.b32.xlu0 %v45, 12
    %v56 = vpop.permute.xlu0 %55
    %59 = vrot.lane.b32.xlu0 %v42, 16
    %v60 = vpop.permute.xlu0 %59
    %62 = vrot.lane.b32.xlu0 %v43, 20
    %v63 = vpop.permute.xlu0 %62
    %65 = vrot.lane.b32.xlu0 %v44, 24
    %v66 = vpop.permute.xlu0 %65
    %68 = vrot.lane.b32.xlu0 %v43, 28
    %v69 = vpop.permute.xlu0 %68
    %71 = vrot.lane.b32.xlu0 %v44, 32
    %v72 = vpop.permute.xlu0 %71
    %74 = vrot.lane.b32.xlu0 %v45, 36
    %v75 = vpop.permute.xlu0 %74
    %77 = vrot.lane.b32.xlu0 %v43, 40
    %v78 = vpop.permute.xlu0 %77
    %80 = vrot.lane.b32.xlu0 %v44, 44
    %v81 = vpop.permute.xlu0 %80
    %83 = vrot.lane.b32.xlu0 %v42, 48
    %v84 = vpop.permute.xlu0 %83
    %86 = vrot.lane.b32.xlu0 %v45, 52
    %v87 = vpop.permute.xlu0 %86
    %89 = vrot.lane.b32.xlu0 %v44, 56
    %v90 = vpop.permute.xlu0 %89
    %92 = vrot.lane.b32.xlu0 %v42, 60
    %v93 = vpop.permute.xlu0 %92
    %vm95 = vcmask 31744
    %v96 = vsel %vm95, %v42, %v48
    %vm97 = vcmask 64512
    %v98 = vsel %vm97, %v96, %v52
    %vm99 = vcmask 97280
    %v100 = vsel %vm99, %v98, %v56
    %vm101 = vcmask 130048
    %v102 = vsel %vm101, %v100, %v60
    %vm103 = vcmask 162816
    %v104 = vsel %vm103, %v102, %v63
    %vm105 = vcmask 195584
    %v106 = vsel %vm105, %v104, %v66
    %vm107 = vcmask 228352
    %v108 = vsel %vm107, %v106, %v69
    %vm109 = vcmask 261120
    %v110 = vsel %vm109, %v108, %v72
    %vm111 = vcmask 293888
    %v112 = vsel %vm111, %v110, %v75
    %vm113 = vcmask 326656
    %v114 = vsel %vm113, %v112, %v78
    %vm115 = vcmask 359424
    %v116 = vsel %vm115, %v114, %v81
    %vm117 = vcmask 392192
    %v118 = vsel %vm117, %v116, %v84
    %vm119 = vcmask 424960
    %v120 = vsel %vm119, %v118, %v87
    %vm121 = vcmask 457728
    %v122 = vsel %vm121, %v120, %v90
    %vm123 = vcmask 490496
    %v124 = vsel %vm123, %v122, %v93
    %125 = vrot.lane.b32.xlu0 %v44, 4
    %v126 = vpop.permute.xlu0 %125
    %128 = vrot.lane.b32.xlu0 %v43, 8
    %v129 = vpop.permute.xlu0 %128
    %131 = vrot.lane.b32.xlu0 %v44, 12
    %v132 = vpop.permute.xlu0 %131
    %v134 = vsel %vm95, %v43, %v126
    %v135 = vsel %vm97, %v134, %v129
    %v136 = vsel %vm99, %v135, %v132
    %v137 = vsel %vm101, %v136, %v60
    %139 = vrot.lane.b32.xlu0 %v137, 64
    %v140 = vpop.permute.xlu0 %139
    %vm142 = vcmask 523264
    %v143 = vsel %vm142, %v124, %v140
    %vm144 = vcmask 680960
    %145 = vst.msk [vmem:[#allocation7] sm:$0x3] %vm144, %v143
    %vm146 = vcmask 25600
    %147 = vst.msk [vmem:[#allocation8] sm:$0x3] %vm146, %v45
    // Predicated region
    $region22: #{model_forward.1} parent=1 // pred_check
      _
    $region23: #{model_forward.1} parent=1 // pred_check_branch
      %149 = sbr.rel (0) target = $region25
    $region24: #{model_forward.1} parent=1 // pred_region
      %s151 = ssub.s32 32, 32
      %152 = vsyncadd [#allocation4], %s151
      %s154 = sshll.u32 [#allocation7], 4
      %s155 = int_to_ptr.vmem [resolvable:$true] %s154
      %157 = dma.vmem_to_hbm [thread:$0]  %s155, 32, %s3, [#allocation4]
    $region25: #{model_forward.1} parent=1 // pred_fallthru
      _
    // Predicated region
    $region26: #{model_forward.1} parent=1 // pred_check
      _
    $region27: #{model_forward.1} parent=1 // pred_check_branch
      %159 = sbr.rel (0) target = $region29
    $region28: #{model_forward.1} parent=1 // pred_region
      %s161 = ssub.s32 32, 32
      %162 = vsyncadd [#allocation9], %s161
      %s164 = sshll.u32 [#allocation8], 4
      %s165 = int_to_ptr.vmem [resolvable:$true] %s164
      %167 = dma.vmem_to_hbm [thread:$0]  %s165, 32, %s4, [#allocation9]
    $region29: #{model_forward.1} parent=1 // pred_fallthru
      _
    // Predicated region
    $region30: #{model_forward.1} parent=1 // pred_check
      _
    $region31: #{model_forward.1} parent=1 // pred_check_branch
      %169 = sbr.rel (0) target = $region33
    $region32: #{model_forward.1} parent=1 // pred_region
      %170 = dma.done [#allocation4], 32
    $region33: #{model_forward.1} parent=1 // pred_fallthru
      _
    // Predicated region
    $region34: #{model_forward.1} parent=1 // pred_check
      _
    $region35: #{model_forward.1} parent=1 // pred_check_branch
      %172 = sbr.rel (0) target = $region37
    $region36: #{model_forward.1} parent=1 // pred_region
      %173 = dma.done [#allocation9], 32
    $region37: #{model_forward.1} parent=1 // pred_fallthru
      _
    %174 = vsyncpa [#allocation3], 1
    %175 = vsyncpa [#allocation6], 1
    %176 = vsyncpa [#allocation4], 1
    %177 = vsyncpa [#allocation9], 1

</llo_original>
